<compile_context>
chip_gen: v6e
topology: v6e:2x2x1
jax: 0.10.0
libtpu: 0.0.40
codegen_flags: <defaults>
</compile_context>

<pallas_src>
import functools

import numpy as np
import jax
import jax.numpy as jnp
from jax import lax
from jax.experimental import pallas as pl
from jax.experimental.pallas import tpu as pltpu


_VMEM = pl.BlockSpec(memory_space=pltpu.MemorySpace.VMEM)
_SMEM = pl.BlockSpec(memory_space=pltpu.MemorySpace.SMEM)


# ----------------------------------------------------------------------------
# Pallas kernels (tiny working set => no grid, whole arrays resident in VMEM)
# ----------------------------------------------------------------------------
def _fwd_kernel(x_ref, w1_ref, b1_ref, w2t_ref, b2_ref, o_ref):
    # y = relu(x @ W1 + b1) @ W2 + b2, with W2 stored transposed (D_OUT, HIDDEN).
    h = jnp.dot(x_ref[...], w1_ref[...], preferred_element_type=jnp.float32)
    h = jnp.maximum(h + b1_ref[...], 0.0)
    w2t = w2t_ref[...]
    if w2t.shape[0] == 1:
        # D_OUT == 1: VPU multiply + lane (XLU) reduction — avoids an MXU pass
        # whose result would be a single masked lane.
        y = jnp.sum(h * w2t, axis=-1, keepdims=True)
    else:
        y = lax.dot_general(h, w2t, (((1,), (1,)), ((), ())),
                            preferred_element_type=jnp.float32)
    o_ref[...] = (y + b2_ref[...]).astype(o_ref.dtype)


def _fused_logpost_kernel(x_ref, y_ref, w1_ref, b1_ref, w2t_ref, b2_ref,
                          stats_ref):
    # One launch: forward pass + sum((y - y_pred)^2) + sum(params^2).
    # stats_ref is a (2,) SMEM output: [sse, sum_of_squared_params] — no
    # padded (1,1) VMEM tiles, no output DMAs for the scalars.
    w1 = w1_ref[...]
    b1 = b1_ref[...]
    w2t = w2t_ref[...]
    b2 = b2_ref[...]

    h = jnp.dot(x_ref[...], w1, preferred_element_type=jnp.float32)
    h = jnp.maximum(h + b1, 0.0)
    if w2t.shape[0] == 1:
        y_pred = jnp.sum(h * w2t, axis=-1, keepdims=True) + b2
    else:
        y_pred = lax.dot_general(h, w2t, (((1,), (1,)), ((), ())),
                                 preferred_element_type=jnp.float32) + b2

    d = y_ref[...] - y_pred
    stats_ref[0] = jnp.sum(d * d)
    stats_ref[1] = (jnp.sum(w1 * w1) + jnp.sum(b1 * b1)
                    + jnp.sum(w2t * w2t) + jnp.sum(b2 * b2))


def _batched_fwd_kernel(x_ref, w1b_ref, b1b_ref, w2bd_ref, b2b_ref, o_ref):
    # All posterior samples in one pass: the sample axis is folded into lanes.
    #   w1b : (D_IN, S*HIDDEN)       (per-sample W1 blocks side by side)
    #   b1b : (1, S*HIDDEN)
    #   w2bd: (S*HIDDEN, S*D_OUT)    block-diagonal second layer
    #   b2b : (1, S*D_OUT)
    # Output is lane-dense (N, S*D_OUT).
    h = jnp.dot(x_ref[...], w1b_ref[...], preferred_element_type=jnp.float32)
    h = jnp.maximum(h + b1b_ref[...], 0.0)
    y = jnp.dot(h, w2bd_ref[...], preferred_element_type=jnp.float32)
    o_ref[...] = (y + b2b_ref[...]).astype(o_ref.dtype)


# ----------------------------------------------------------------------------
# Jitted wrappers (all glue fused around the pallas_call, no eager dispatches)
# ----------------------------------------------------------------------------
@jax.jit
def mlp_forward_pallas(x, w1, b1, w2t, b2):
    n = x.shape[0]
    d_out = w2t.shape[0]
    return pl.pallas_call(
        _fwd_kernel,
        out_shape=jax.ShapeDtypeStruct((n, d_out), jnp.float32),
        in_specs=[_VMEM] * 5,
        out_specs=_VMEM,
    )(x, w1, b1, w2t, b2)


@functools.partial(jax.jit, static_argnames=("sigmasq", "nu1", "nu2"))
def log_posterior_pallas(x, y, params, tausq, *, sigmasq, nu1, nu2):
    # Pure function of (data, params pytree, device-resident tausq): a single
    # fused Pallas kernel emits the two reduction scalars via SMEM, the prior
    # arithmetic stays as jitted scalar glue around the call.
    w1, b1, w2t, b2 = params
    stats = pl.pallas_call(
        _fused_logpost_kernel,
        out_shape=jax.ShapeDtypeStruct((2,), jnp.float32),
        in_specs=[_VMEM] * 6,
        out_specs=_SMEM,
    )(x, y, w1, b1, w2t, b2)
    sse = stats[0]
    wss = stats[1]
    n = x.shape[0]                      # static under jit — no extra recompiles
    log_tausq = jnp.log(tausq)          # NaN if tausq <= 0 (same as PyTorch ref)
    part1 = -0.5 * n * log_tausq - 0.5 * sse / tausq
    part2 = -(0.5 / sigmasq) * wss
    part3 = -2.0 * (nu1 + 1.0) * log_tausq - nu2 / tausq
    return part1 + part2 + part3


@jax.jit
def mlp_forward_samples_pallas(x, w1s, b1s, w2ts, b2s):
    # One no-grid kernel for ALL S posterior samples: fold the sample axis
    # into the lane dimension (packing is jitted and fused with the launch).
    #   w1s : (S, D_IN, HIDDEN)   b1s: (S, 1, HIDDEN)
    #   w2ts: (S, D_OUT, HIDDEN)  b2s: (S, 1, D_OUT)
    s_count, d_in, hidden = w1s.shape
    d_out = w2ts.shape[1]
    n = x.shape[0]

    w1_big = jnp.transpose(w1s, (1, 0, 2)).reshape(d_in, s_count * hidden)
    b1_big = b1s.reshape(1, s_count * hidden)
    # Block-diagonal second layer: column block t holds sample t's weights.
    eye = jnp.eye(s_count, dtype=w2ts.dtype)
    w2_bd = jnp.einsum("soh,st->shto", w2ts, eye).reshape(
        s_count * hidden, s_count * d_out)
    b2_big = b2s.reshape(1, s_count * d_out)

    y = pl.pallas_call(
        _batched_fwd_kernel,
        out_shape=jax.ShapeDtypeStruct((n, s_count * d_out), jnp.float32),
        in_specs=[_VMEM] * 5,
        out_specs=_VMEM,
    )(x, w1_big, b1_big, w2_bd, b2_big)

    # Present as stacked (S, N, D_OUT) predictions (kernel output stays
    # lane-dense; this transpose is fused into the same jit).
    return jnp.transpose(y.reshape(n, s_count, d_out), (1, 0, 2))


# ----------------------------------------------------------------------------
# Base model (simple 2-layer MLP regressor) + Bayesian wrapper
# ----------------------------------------------------------------------------
class MLPRegressor:
    """Deterministic 2-layer MLP: (N, D_in) -> (N, D_out). Forward runs in Pallas.

    W2 is stored pre-transposed as (D_OUT, HIDDEN) so no per-call transpose is
    needed anywhere.
    """

    def __init__(self, d_in, hidden, d_out, key):
        k1, k2, k3, k4 = jax.random.split(key, 4)
        bound1 = 1.0 / np.sqrt(d_in)
        bound2 = 1.0 / np.sqrt(hidden)
        self.w1 = jax.random.uniform(k1, (d_in, hidden), jnp.float32, -bound1, bound1)
        self.b1 = jax.random.uniform(k2, (1, hidden), jnp.float32, -bound1, bound1)
        self.w2t = jax.random.uniform(k3, (d_out, hidden), jnp.float32, -bound2, bound2)
        self.b2 = jax.random.uniform(k4, (1, d_out), jnp.float32, -bound2, bound2)

    def parameters(self):
        return [self.w1, self.b1, self.w2t, self.b2]

    def set_parameters(self, params):
        self.w1, self.b1, self.w2t, self.b2 = params

    def forward(self, x):
        return mlp_forward_pallas(x, self.w1, self.b1, self.w2t, self.b2)


class BayesianRegressorWrapper:
    """JAX/Pallas port of the PyTorch BayesianRegressorWrapper."""

    def __init__(self, base_model, sigmasq=25.0, nu1=1.0, nu2=1.0):
        self.base_model = base_model
        self.sigmasq, self.nu1, self.nu2 = sigmasq, nu1, nu2
        self.tausq = None
        self.param_dist = []

    # forward(i) -> base_model.forward(i)   (Pallas MLP kernel)
    def forward(self, i):
        return self.base_model.forward(i)

    __call__ = forward

    def parameters(self):
        return self.base_model.parameters()

    def set_params(self, new_w, new_tausq=None):
        self.base_model.set_parameters(list(new_w))
        if new_tausq is not None:
            self.tausq = jnp.asarray(new_tausq, jnp.float32)

    def update_param_dist(self, param_dist, extend=True):
        if extend:
            self.param_dist.extend(param_dist)
        else:
            self.param_dist = param_dist

    def compute_pred_dist(self, i):
        """Predictions for all posterior samples: ONE no-grid Pallas launch.

        Returns a stacked (S, N, D_OUT) array (no per-sample device slices).
        """
        if not self.param_dist:
            return jnp.zeros((0, i.shape[0], 0), jnp.float32)
        w1s = jnp.stack([jnp.asarray(w[0], jnp.float32) for w in self.param_dist])
        b1s = jnp.stack([jnp.asarray(w[1], jnp.float32) for w in self.param_dist])
        w2ts = jnp.stack([jnp.asarray(w[2], jnp.float32) for w in self.param_dist])
        b2s = jnp.stack([jnp.asarray(w[3], jnp.float32) for w in self.param_dist])
        return mlp_forward_samples_pallas(i, w1s, b1s, w2ts, b2s)

    def compute_log_posterior(self, X, y, w=None, tausq=None):
        # Pure: proposal params / tausq are passed straight to the jitted
        # posterior function — no model mutation + restore, no per-call
        # conversion of an already-device-resident tausq.
        if w is not None:
            params = tuple(jnp.asarray(p, jnp.float32) for p in w)
        else:
            params = tuple(self.parameters())
        t = self.tausq if tausq is None else jnp.asarray(tausq, jnp.float32)
        return log_posterior_pallas(
            X, y, params, t,
            sigmasq=float(self.sigmasq), nu1=float(self.nu1),
            nu2=float(self.nu2))


# ----------------------------------------------------------------------------
# Main
# ----------------------------------------------------------------------------
if __name__ == "__main__":
    key = jax.random.PRNGKey(0)
    k_x, k_y, k_model, k_noise = jax.random.split(key, 4)

    N, D_IN, HIDDEN, D_OUT = 8, 16, 32, 1
    x = jax.random.normal(k_x, (N, D_IN), jnp.float32)
    y = jax.random.normal(k_y, (N, D_OUT), jnp.float32)

    base = MLPRegressor(D_IN, HIDDEN, D_OUT, k_model)
    model = BayesianRegressorWrapper(base, sigmasq=25.0, nu1=1.0, nu2=1.0)
    model.tausq = jnp.float32(1.0)   # device-resident, set once

    # Forward pass (Pallas MLP kernel, jitted, no grid)
    y_pred = model.forward(x)
    jax.block_until_ready(y_pred)
    assert y_pred.shape == (N, D_OUT)
    ref = jnp.maximum(x @ base.w1 + base.b1, 0.0) @ base.w2t.T + base.b2
    np.testing.assert_allclose(np.asarray(y_pred), np.asarray(ref),
                               rtol=1e-5, atol=1e-5)

    # Log posterior (single fused Pallas kernel: forward + SSE + sum-of-squares
    # -> one (2,) SMEM output; pure jitted wrapper, no param mutation)
    lp = model.compute_log_posterior(x, y)
    jax.block_until_ready(lp)
    flat = jnp.concatenate([p.reshape(-1) for p in base.parameters()])
    sse_check = jnp.sum((y - ref) ** 2)
    tausq_np = float(model.tausq)
    lp_ref = (-0.5 * N * np.log(tausq_np) - 0.5 * sse_check / tausq_np
              - (0.5 / model.sigmasq) * jnp.sum(flat ** 2)
              - 2.0 * (model.nu1 + 1.0) * np.log(tausq_np)
              - model.nu2 / tausq_np)
    np.testing.assert_allclose(np.asarray(lp), np.asarray(lp_ref),
                               rtol=1e-4, atol=1e-4)

    # Same result when the proposal params are passed explicitly (pure path)
    lp2 = model.compute_log_posterior(x, y, w=base.parameters(), tausq=1.0)
    jax.block_until_ready(lp2)
    np.testing.assert_allclose(np.asarray(lp2), np.asarray(lp_ref),
                               rtol=1e-4, atol=1e-4)

    # Posterior predictive distribution: 3 samples, ONE fused no-grid launch
    S = 3
    keys = jax.random.split(k_noise, 4 * S)
    param_dist = []
    for s in range(S):
        ks = keys[4 * s:4 * (s + 1)]
        param_dist.append([
            base.w1 + 0.01 * jax.random.normal(ks[0], base.w1.shape, jnp.float32),
            base.b1 + 0.01 * jax.random.normal(ks[1], base.b1.shape, jnp.float32),
            base.w2t + 0.01 * jax.random.normal(ks[2], base.w2t.shape, jnp.float32),
            base.b2 + 0.01 * jax.random.normal(ks[3], base.b2.shape, jnp.float32),
        ])
    model.update_param_dist(param_dist)
    preds = model.compute_pred_dist(x)          # (S, N, D_OUT) stacked array
    jax.block_until_ready(preds)
    assert preds.shape == (S, N, D_OUT)
    w1_s, b1_s, w2t_s, b2_s = param_dist[1]
    ref_s = jnp.maximum(x @ w1_s + b1_s, 0.0) @ w2t_s.T + b2_s
    np.testing.assert_allclose(np.asarray(preds[1]), np.asarray(ref_s),
                               rtol=1e-5, atol=1e-5)

    print("KERNEL_OK")
</pallas_src>

<mosaic_0001>
module attributes {stable_mosaic.version = 11 : i64} {
  func.func @_fwd_kernel(%arg0: memref<8x16xf32, #tpu.memory_space<vmem>>, %arg1: memref<16x32xf32, #tpu.memory_space<vmem>>, %arg2: memref<1x32xf32, #tpu.memory_space<vmem>>, %arg3: memref<1x32xf32, #tpu.memory_space<vmem>>, %arg4: memref<1x1xf32, #tpu.memory_space<vmem>>, %arg5: memref<8x1xf32, #tpu.memory_space<vmem>>) attributes {dimension_semantics = [], scalar_prefetch = 0 : i64, scratch_operands = 0 : i64, tpu.core_type = #tpu.core_type<tc>} {
    %c0 = arith.constant 0 : index
    %c0_0 = arith.constant 0 : index
    %0 = vector.load %arg0[%c0, %c0_0] : memref<8x16xf32, #tpu.memory_space<vmem>>, vector<8x16xf32>
    %c0_1 = arith.constant 0 : index
    %c0_2 = arith.constant 0 : index
    %1 = vector.load %arg1[%c0_1, %c0_2] : memref<16x32xf32, #tpu.memory_space<vmem>>, vector<16x32xf32>
    %cst = arith.constant dense<0.000000e+00> : vector<8x32xf32>
    %2 = tpu.matmul %0, %1, %cst {dimension_numbers = #tpu.dot_dimension_numbers<[1], [0], [0], [1], [0, 0, 1, 1], [], []>} : vector<8x16xf32>, vector<16x32xf32>, vector<8x32xf32> -> vector<8x32xf32>
    %c0_3 = arith.constant 0 : index
    %c0_4 = arith.constant 0 : index
    %3 = vector.load %arg2[%c0_3, %c0_4] : memref<1x32xf32, #tpu.memory_space<vmem>>, vector<1x32xf32>
    %4 = vector.broadcast %3 : vector<1x32xf32> to vector<8x32xf32>
    %5 = arith.addf %2, %4 : vector<8x32xf32>
    %cst_5 = arith.constant 0.000000e+00 : f32
    %6 = vector.broadcast %cst_5 : f32 to vector<8x32xf32>
    %7 = arith.maximumf %5, %6 : vector<8x32xf32>
    %c0_6 = arith.constant 0 : index
    %c0_7 = arith.constant 0 : index
    %8 = vector.load %arg3[%c0_6, %c0_7] : memref<1x32xf32, #tpu.memory_space<vmem>>, vector<1x32xf32>
    %9 = vector.broadcast %8 : vector<1x32xf32> to vector<8x32xf32>
    %10 = arith.mulf %7, %9 : vector<8x32xf32>
    %cst_8 = arith.constant dense<0.000000e+00> : vector<8xf32>
    %11 = vector.multi_reduction <add>, %10, %cst_8 [1] : vector<8x32xf32> to vector<8xf32>
    %12 = vector.shape_cast %11 : vector<8xf32> to vector<8x1xf32>
    %c0_9 = arith.constant 0 : index
    %c0_10 = arith.constant 0 : index
    %13 = vector.load %arg4[%c0_9, %c0_10] : memref<1x1xf32, #tpu.memory_space<vmem>>, vector<1x1xf32>
    %14 = vector.broadcast %13 : vector<1x1xf32> to vector<8x1xf32>
    %15 = arith.addf %12, %14 : vector<8x1xf32>
    %c0_11 = arith.constant 0 : index
    %c0_12 = arith.constant 0 : index
    %16 = vector.load %arg5[%c0_11, %c0_12] : memref<8x1xf32, #tpu.memory_space<vmem>>, vector<8x1xf32>
    tpu.vector_store %arg5[%c0_11, %c0_12], %15 {strides = array<i32>} : memref<8x1xf32, #tpu.memory_space<vmem>>, vector<8x1xf32>,
    return
  }
}

</mosaic_0001>

<llo_original>
// kernel: mlp_forward_pallas.1
$region0: #{mlp_forward_pallas.1}
  #allocation0 [shape = 'u32[]', space=smem, size = 0x4, offset = 0x4, fixed_abs, tag = 'smem constant byte address 0x4 - core index']
  #allocation1 [shape = 'u32[144,128]{1,0:T(1,128)}', space=vmem, size = 0x12000, scoped, tag = 'internal scratch']
  #allocation2 [shape = 'f32[1,1]{1,0:T(1,128)S(1)}', space=vmem, size = 0x200, scoped, tag = 'scoped memory for mlp_forward_pallas.1']
  %s0 = inlined_call_operand.hbm [shape: f32[8,16], index: 0, kind: input, shape index: {}]
  %s1 = inlined_call_operand.hbm [shape: f32[16,32], index: 1, kind: input, shape index: {}]
  %s2 = inlined_call_operand.vmem [shape: f32[1,32], index: 2, kind: input, shape index: {}]
  %s3 = inlined_call_operand.vmem [shape: f32[1,32], index: 3, kind: input, shape index: {}]
  %s4 = inlined_call_operand.<no memory space> [shape: f32[1,1], index: 4, kind: input, shape index: {}]
  %s5 = inlined_call_operand.vmem [shape: f32[8,1], index: 5, kind: output, shape index: {}]
  %s6 = sld [smem:[#allocation0]]
  $region38: #{mlp_forward_pallas.1} parent=0
    _
  %s8 = ssub.s32 1, %s6
  %s9 = scalar_select 0, %s8, %s6
  %v10 = vstv %s4
  %11 = vst [vmem:[#allocation2] sm:$0x1] %v10
  $region1: #{mlp_forward_pallas.1} parent=0
    #allocation3 [shape = 'u8[4096]{0}', space=vmem, size = 0x1000, scoped, tag = 'input window, operand 0, single buffered']
    #allocation4 [shape = 's32[1]{0}', space=sflag, size = 0x4, scoped, tag = 'scoped memory for mlp_forward_pallas.1']
    #allocation5 [shape = 'u8[8192]{0}', space=vmem, size = 0x2000, scoped, tag = 'input window, operand 1, single buffered']
    #allocation6 [shape = 's32[1]{0}', space=sflag, size = 0x4, scoped, tag = 'scoped memory for mlp_forward_pallas.1']
    %12 = vsyncpa [#allocation4], 0
    %13 = vsyncpa [#allocation6], 0
    // Predicated region
    $region2: #{mlp_forward_pallas.1} parent=1 // pred_check
      _
    $region3: #{mlp_forward_pallas.1} parent=1 // pred_check_branch
      %15 = sbr.rel (0) target = $region5
    $region4: #{mlp_forward_pallas.1} parent=1 // pred_region
      %s17 = ssub.s32 128, 128
      %18 = vsyncadd [#allocation4], %s17
      %s20 = sshll.u32 [#allocation3], 4
      %s21 = int_to_ptr.vmem [resolvable:$true] %s20
      %23 = dma.hbm_to_vmem [thread:$0]  %s0, 128, %s21, [#allocation4]
    $region5: #{mlp_forward_pallas.1} parent=1 // pred_fallthru
      _
    // Predicated region
    $region6: #{mlp_forward_pallas.1} parent=1 // pred_check
      _
    $region7: #{mlp_forward_pallas.1} parent=1 // pred_check_branch
      %25 = sbr.rel (0) target = $region9
    $region8: #{mlp_forward_pallas.1} parent=1 // pred_region
      %s27 = ssub.s32 256, 256
      %28 = vsyncadd [#allocation6], %s27
      %s29 = sshll.u32 [#allocation5], 4
      %s30 = int_to_ptr.vmem [resolvable:$true] %s29
      %35 = dma.hbm_to_vmem [thread:$0]  %s1, 256, %s30, [#allocation6], 128, 128, 8
    $region9: #{mlp_forward_pallas.1} parent=1 // pred_fallthru
      _
    // Predicated region
    $region10: #{mlp_forward_pallas.1} parent=1 // pred_check
      _
    $region11: #{mlp_forward_pallas.1} parent=1 // pred_check_branch
      %37 = sbr.rel (0) target = $region13
    $region12: #{mlp_forward_pallas.1} parent=1 // pred_region
      _
    $region13: #{mlp_forward_pallas.1} parent=1 // pred_fallthru
      _
    // Predicated region
    $region14: #{mlp_forward_pallas.1} parent=1 // pred_check
      _
    $region15: #{mlp_forward_pallas.1} parent=1 // pred_check_branch
      %39 = sbr.rel (0) target = $region17
    $region16: #{mlp_forward_pallas.1} parent=1 // pred_region
      _
    $region17: #{mlp_forward_pallas.1} parent=1 // pred_fallthru
      _
    // Predicated region
    $region18: #{mlp_forward_pallas.1} parent=1 // pred_check
      _
    $region19: #{mlp_forward_pallas.1} parent=1 // pred_check_branch
      %41 = sbr.rel (0) target = $region21
    $region20: #{mlp_forward_pallas.1} parent=1 // pred_region
      _
    $region21: #{mlp_forward_pallas.1} parent=1 // pred_fallthru
      _
    // Predicated region
    $region22: #{mlp_forward_pallas.1} parent=1 // pred_check
      _
    $region23: #{mlp_forward_pallas.1} parent=1 // pred_check_branch
      %43 = sbr.rel (0) target = $region25
    $region24: #{mlp_forward_pallas.1} parent=1 // pred_region
      %44 = dma.done [#allocation4], 128
    $region25: #{mlp_forward_pallas.1} parent=1 // pred_fallthru
      _
    // Predicated region
    $region26: #{mlp_forward_pallas.1} parent=1 // pred_check
      _
    $region27: #{mlp_forward_pallas.1} parent=1 // pred_check_branch
      %46 = sbr.rel (0) target = $region29
    $region28: #{mlp_forward_pallas.1} parent=1 // pred_region
      %47 = dma.done [#allocation6], 256
    $region29: #{mlp_forward_pallas.1} parent=1 // pred_fallthru
      _
    %v48 = vld [vmem:[#allocation3] sm:$0xff]
    %v49 = vld [vmem:[#allocation5] sm:$0xff]
    %v50 = vld [vmem:[#allocation5 + $0x8] sm:$0xff]
    %v51 = vld [vmem:[%s2] sm:$0x1]
    %v53 = vlaneseq
    %v54 = vshrl.u32 %v53, 7
    %v55 = vsub.s32 0, %v54
    %v56 = vrot.slane %v51, %v55
    %vm58 = vcmask 130048
    %v60 = vsel %vm58, %v48, 0
    %62 = vmatprep.subr.mxu0 0.0
    %63 = vmatpush1.msra.mxu0 0.0
    %64 = vmatprep.subr.mxu0 0.0
    %65 = vmatpush1.msra.mxu0 0.0
    %66 = vmatprep.subr.mxu0 0.0
    %67 = vmatpush1.msra.mxu0 0.0
    %68 = vmatprep.subr.mxu0 0.0
    %69 = vmatpush1.msra.mxu0 0.0
    %70 = vmatprep.subr.mxu0 0.0
    %71 = vmatpush1.msra.mxu0 0.0
    %72 = vmatprep.subr.mxu0 0.0
    %73 = vmatpush1.msra.mxu0 0.0
    %74 = vmatprep.subr.mxu0 0.0
    %75 = vmatpush1.msra.mxu0 0.0
    %76 = vmatprep.subr.mxu0 0.0
    %77 = vmatpush1.msra.mxu0 0.0
    %78 = vmatprep.subr.mxu0 0.0
    %79 = vmatpush1.msra.mxu0 0.0
    %80 = vmatprep.subr.mxu0 0.0
    %81 = vmatpush1.msra.mxu0 0.0
    %82 = vmatprep.subr.mxu0 0.0
    %83 = vmatpush1.msra.mxu0 0.0
    %84 = vmatprep.subr.mxu0 0.0
    %85 = vmatpush1.msra.mxu0 0.0
    %86 = vmatprep.subr.mxu0 0.0
    %87 = vmatpush1.msra.mxu0 0.0
    %88 = vmatprep.subr.mxu0 0.0
    %89 = vmatpush1.msra.mxu0 0.0
    %90 = vmatprep.subr.mxu0 0.0
    %91 = vmatpush1.msra.mxu0 %v50
    %92 = vmatprep.subr.mxu0 0.0
    %93 = vmatpush1.msra.mxu0 %v49
    %94 = vmatprep.subr.mxu0 0.0
    %95 = vmatpush2.msra.mxu0 0.0
    %96 = vmatprep.subr.mxu0 0.0
    %97 = vmatpush2.msra.mxu0 0.0
    %98 = vmatprep.subr.mxu0 0.0
    %99 = vmatpush2.msra.mxu0 0.0
    %100 = vmatprep.subr.mxu0 0.0
    %101 = vmatpush2.msra.mxu0 0.0
    %102 = vmatprep.subr.mxu0 0.0
    %103 = vmatpush2.msra.mxu0 0.0
    %104 = vmatprep.subr.mxu0 0.0
    %105 = vmatpush2.msra.mxu0 0.0
    %106 = vmatprep.subr.mxu0 0.0
    %107 = vmatpush2.msra.mxu0 0.0
    %108 = vmatprep.subr.mxu0 0.0
    %109 = vmatpush2.msra.mxu0 0.0
    %110 = vmatprep.subr.mxu0 0.0
    %111 = vmatpush2.msra.mxu0 0.0
    %112 = vmatprep.subr.mxu0 0.0
    %113 = vmatpush2.msra.mxu0 0.0
    %114 = vmatprep.subr.mxu0 0.0
    %115 = vmatpush2.msra.mxu0 0.0
    %116 = vmatprep.subr.mxu0 0.0
    %117 = vmatpush2.msra.mxu0 0.0
    %118 = vmatprep.subr.mxu0 0.0
    %119 = vmatpush2.msra.mxu0 0.0
    %120 = vmatprep.subr.mxu0 0.0
    %121 = vmatpush2.msra.mxu0 0.0
    %122 = vmatprep.subr.mxu0 0.0
    %123 = vmatpush2.msra.mxu0 0.0
    %124 = vmatprep.subr.mxu0 0.0
    %125 = vmatpush2.msra.mxu0 0.0
    %126 = vmatprep.mubr.f32.mxu0 0.0
    %127 = vmatmul.mubr.f32.gmra.mxu0 %v60
    %v128 = vpop.f32.mrf.mxu0
    %v129 = vadd.f32 %v56, %v128
    %v130 = vpop.f32.mrf.mxu0
    %131 = vdwg.mxu0
    %v132 = vmax.f32 %v129, 0.0
    %v133 = vld [vmem:[%s3] sm:$0x1]
    %v135 = vlaneseq
    %v136 = vshrl.u32 %v135, 7
    %v137 = vsub.s32 0, %v136
    %v138 = vrot.slane %v133, %v137
    %v140 = vmul.f32 %v132, %v138
    %vm141 = vcmask 261120
    %v142 = vsel %vm141, %v140, 0.0
    %143 = vadd.xlane.f32.xlu0 %v142
    %v144 = vpop.xlane.xlu0 %143
    %v145 = vld [vmem:[#allocation2] sm:$0x1]
    %v147 = vlaneseq
    %v148 = vshrl.u32 %v147, 7
    %v149 = vsub.s32 0, %v148
    %v150 = vrot.slane %v145, %v149
    %v152 = vadd.f32 %v144, %v150
    %vm153 = vcmask 7168
    %154 = vst.msk [vmem:[%s5] sm:$0xff] %vm153, %v152
    // Predicated region
    $region30: #{mlp_forward_pallas.1} parent=1 // pred_check
      _
    $region31: #{mlp_forward_pallas.1} parent=1 // pred_check_branch
      %156 = sbr.rel (0) target = $region33
    $region32: #{mlp_forward_pallas.1} parent=1 // pred_region
      _
    $region33: #{mlp_forward_pallas.1} parent=1 // pred_fallthru
      _
    // Predicated region
    $region34: #{mlp_forward_pallas.1} parent=1 // pred_check
      _
    $region35: #{mlp_forward_pallas.1} parent=1 // pred_check_branch
      %158 = sbr.rel (0) target = $region37
    $region36: #{mlp_forward_pallas.1} parent=1 // pred_region
      _
    $region37: #{mlp_forward_pallas.1} parent=1 // pred_fallthru
      _
    %159 = vsyncpa [#allocation4], 1
    %160 = vsyncpa [#allocation6], 1

</llo_original>
